<compile_context>
chip_gen: v7x
topology: tpu7x:2x2x1
jax: 0.10.0
libtpu: 0.0.40
codegen_flags: <defaults>
</compile_context>

<pallas_src>
import jax
import jax.numpy as jnp
from jax.experimental import pallas as pl
from jax.experimental.pallas import tpu as pltpu


def _round_up(x, m):
    return ((x + m - 1) // m) * m


def _cdiv(a, b):
    return (a + b - 1) // b


def autoencoder_kernel(w1_ref, b1_ref, w2_ref, b2_ref, x_ref, o_ref):
    """x_ref / o_ref: [3, 8, TILE_M]  (feature plane, sample group, lane)."""
    # Three dense [8, TILE_M] feature planes (lane- AND sublane-dense loads).
    x0 = x_ref[0, :, :].astype(jnp.float32)
    x1 = x_ref[1, :, :].astype(jnp.float32)
    x2 = x_ref[2, :, :].astype(jnp.float32)

    # Encoder: h_j = relu(sum_k W1[j,k] * x_k + b1[j]) -- unrolled VPU FMAs.
    h0 = jnp.maximum(
        w1_ref[0, 0] * x0 + w1_ref[0, 1] * x1 + w1_ref[0, 2] * x2 + b1_ref[0], 0.0)
    h1 = jnp.maximum(
        w1_ref[1, 0] * x0 + w1_ref[1, 1] * x1 + w1_ref[1, 2] * x2 + b1_ref[1], 0.0)

    # Decoder: y_f = relu(W2[f,0]*h0 + W2[f,1]*h1 + b2[f]); each plane is stored
    # directly (lane-dense unmasked vst for full tiles, no temporaries).
    o_ref[0, :, :] = jnp.maximum(
        w2_ref[0, 0] * h0 + w2_ref[0, 1] * h1 + b2_ref[0], 0.0).astype(o_ref.dtype)
    o_ref[1, :, :] = jnp.maximum(
        w2_ref[1, 0] * h0 + w2_ref[1, 1] * h1 + b2_ref[1], 0.0).astype(o_ref.dtype)
    o_ref[2, :, :] = jnp.maximum(
        w2_ref[2, 0] * h0 + w2_ref[2, 1] * h1 + b2_ref[2], 0.0).astype(o_ref.dtype)


def _pick_tile_m(m):
    tile_m = _round_up(_cdiv(m, 8), 128)     # aim for ~8 grid steps when large
    tile_m = max(min(tile_m, 16384), 1024)   # v5e-safe VMEM cap, amortized step overhead
    return min(tile_m, _round_up(m, 128))    # never exceed the (lane-padded) array


def autoencoder_forward_packed(xp, w1, b1, w2, b2, tile_m=None):
    """Zero-glue entry point. xp: [3, 8, M] packed activations."""
    _, _, m = xp.shape
    if tile_m is None:
        tile_m = _pick_tile_m(m)
    tile_m = min(_round_up(tile_m, 128), _round_up(m, 128))

    smem = pl.BlockSpec(memory_space=pltpu.MemorySpace.SMEM)
    return pl.pallas_call(
        autoencoder_kernel,
        out_shape=jax.ShapeDtypeStruct((3, 8, m), xp.dtype),
        grid=(pl.cdiv(m, tile_m),),                       # ragged last block, no pre-pad
        in_specs=[smem, smem, smem, smem,                  # weights: SMEM-resident
                  pl.BlockSpec((3, 8, tile_m), lambda i: (0, 0, i))],
        out_specs=pl.BlockSpec((3, 8, tile_m), lambda i: (0, 0, i)),
        compiler_params=pltpu.CompilerParams(
            dimension_semantics=("parallel",)),            # v7x megacore split
    )(w1, b1, w2, b2, xp)


def autoencoder_forward(x, w1, b1, w2, b2, tile_m=None):
    """x: [N, 3]; w1: [2, 3]; b1: [2]; w2: [3, 2]; b2: [3] (PyTorch Linear layout)."""
    n = x.shape[0]
    m = _cdiv(max(n, 1), 8)                  # lanes per feature plane

    # Pack [N, 3] -> [3, 8, M]: a single relayout pass each way (the <=7-row pad
    # fuses into it under jit). This glue exists only because the module API is
    # batch-major [N, 3]; use autoencoder_forward_packed to skip it entirely.
    pad = 8 * m - n
    xp = jnp.pad(x, ((0, pad), (0, 0))) if pad else x
    xp = jnp.transpose(xp.reshape(8, m, 3), (2, 0, 1))    # [3, 8, M]

    out_p = autoencoder_forward_packed(xp, w1, b1, w2, b2, tile_m=tile_m)

    # Unpack [3, 8, M] -> [N, 3]; the padded tail samples are sliced away here.
    out = jnp.transpose(out_p, (1, 2, 0)).reshape(8 * m, 3)
    return out[:n]


if __name__ == "__main__":
    key = jax.random.PRNGKey(0)
    kx, k1, k2, k3, k4 = jax.random.split(key, 5)

    # Small shapes consistent with the module: batch=8, in_features=3.
    N = 8
    x = jax.random.normal(kx, (N, 3), dtype=jnp.float32)

    # Deterministic parameters (shapes of nn.Linear(3,2) / nn.Linear(2,3)).
    w1 = jax.random.uniform(k1, (2, 3), jnp.float32, minval=-0.5, maxval=0.5)
    b1 = jax.random.uniform(k2, (2,), jnp.float32, minval=-0.5, maxval=0.5)
    w2 = jax.random.uniform(k3, (3, 2), jnp.float32, minval=-0.5, maxval=0.5)
    b2 = jax.random.uniform(k4, (3,), jnp.float32, minval=-0.5, maxval=0.5)

    def ref_fn(xv):
        return jnp.maximum(jnp.maximum(xv @ w1.T + b1, 0.0) @ w2.T + b2, 0.0)

    fwd = jax.jit(autoencoder_forward, static_argnames="tile_m")

    # Module-scale batch: single (partial) block.
    out = jax.block_until_ready(fwd(x, w1, b1, w2, b2))
    assert out.shape == (N, 3)
    assert jnp.allclose(out, ref_fn(x), atol=1e-5, rtol=1e-5)

    # Batch not a multiple of 8: exercises group padding + masked lane writes.
    N2 = 300
    x2 = jax.random.normal(jax.random.PRNGKey(1), (N2, 3), dtype=jnp.float32)
    out2 = jax.block_until_ready(fwd(x2, w1, b1, w2, b2))
    assert out2.shape == (N2, 3)
    assert jnp.allclose(out2, ref_fn(x2), atol=1e-5, rtol=1e-5)

    # Multi-step grid with a ragged last block (small tile override).
    N3 = 5001
    x3 = jax.random.normal(jax.random.PRNGKey(2), (N3, 3), dtype=jnp.float32)
    out3 = jax.block_until_ready(fwd(x3, w1, b1, w2, b2, tile_m=256))
    assert out3.shape == (N3, 3)
    assert jnp.allclose(out3, ref_fn(x3), atol=1e-5, rtol=1e-5)

    print("KERNEL_OK")
</pallas_src>

<mosaic_0001>
module attributes {stable_mosaic.version = 11 : i64} {
  func.func @autoencoder_kernel(%arg0: i32, %arg1: memref<2x3xf32, #tpu.memory_space<smem>>, %arg2: memref<2xf32, #tpu.memory_space<smem>>, %arg3: memref<3x2xf32, #tpu.memory_space<smem>>, %arg4: memref<3xf32, #tpu.memory_space<smem>>, %arg5: memref<3x8x128xf32, #tpu.memory_space<vmem>>, %arg6: memref<3x8x128xf32, #tpu.memory_space<vmem>>) attributes {dimension_semantics = [#tpu.dimension_semantics<parallel>], iteration_bounds = array<i64: 1>, scalar_prefetch = 0 : i64, scratch_operands = 0 : i64, tpu.core_type = #tpu.core_type<tc>, window_params = [{transform_indices = @transform_0, window_bounds = array<i64: 2, 3>}, {transform_indices = @transform_1, window_bounds = array<i64: 2>}, {transform_indices = @transform_2, window_bounds = array<i64: 3, 2>}, {transform_indices = @transform_3, window_bounds = array<i64: 3>}, {transform_indices = @transform_4, window_bounds = array<i64: 3, 8, 128>}, {transform_indices = @transform_5, window_bounds = array<i64: 3, 8, 128>}]} {
    %c0 = arith.constant 0 : index
    %c0_0 = arith.constant 0 : index
    %c0_1 = arith.constant 0 : index
    %0 = vector.load %arg5[%c0, %c0_0, %c0_1] : memref<3x8x128xf32, #tpu.memory_space<vmem>>, vector<1x8x128xf32>
    %1 = vector.shape_cast %0 : vector<1x8x128xf32> to vector<8x128xf32>
    %c1 = arith.constant 1 : index
    %c0_2 = arith.constant 0 : index
    %c0_3 = arith.constant 0 : index
    %2 = vector.load %arg5[%c1, %c0_2, %c0_3] : memref<3x8x128xf32, #tpu.memory_space<vmem>>, vector<1x8x128xf32>
    %3 = vector.shape_cast %2 : vector<1x8x128xf32> to vector<8x128xf32>
    %c2 = arith.constant 2 : index
    %c0_4 = arith.constant 0 : index
    %c0_5 = arith.constant 0 : index
    %4 = vector.load %arg5[%c2, %c0_4, %c0_5] : memref<3x8x128xf32, #tpu.memory_space<vmem>>, vector<1x8x128xf32>
    %5 = vector.shape_cast %4 : vector<1x8x128xf32> to vector<8x128xf32>
    %c0_6 = arith.constant 0 : index
    %c0_7 = arith.constant 0 : index
    %6 = memref.load %arg1[%c0_6, %c0_7] : memref<2x3xf32, #tpu.memory_space<smem>>
    %7 = vector.broadcast %6 : f32 to vector<8x128xf32>
    %8 = arith.mulf %7, %1 : vector<8x128xf32>
    %c0_8 = arith.constant 0 : index
    %c1_9 = arith.constant 1 : index
    %9 = memref.load %arg1[%c0_8, %c1_9] : memref<2x3xf32, #tpu.memory_space<smem>>
    %10 = vector.broadcast %9 : f32 to vector<8x128xf32>
    %11 = arith.mulf %10, %3 : vector<8x128xf32>
    %12 = arith.addf %8, %11 : vector<8x128xf32>
    %c0_10 = arith.constant 0 : index
    %c2_11 = arith.constant 2 : index
    %13 = memref.load %arg1[%c0_10, %c2_11] : memref<2x3xf32, #tpu.memory_space<smem>>
    %14 = vector.broadcast %13 : f32 to vector<8x128xf32>
    %15 = arith.mulf %14, %5 : vector<8x128xf32>
    %16 = arith.addf %12, %15 : vector<8x128xf32>
    %c0_12 = arith.constant 0 : index
    %17 = memref.load %arg2[%c0_12] : memref<2xf32, #tpu.memory_space<smem>>
    %18 = vector.broadcast %17 : f32 to vector<8x128xf32>
    %19 = arith.addf %16, %18 : vector<8x128xf32>
    %cst = arith.constant 0.000000e+00 : f32
    %20 = vector.broadcast %cst : f32 to vector<8x128xf32>
    %21 = arith.maximumf %19, %20 : vector<8x128xf32>
    %c1_13 = arith.constant 1 : index
    %c0_14 = arith.constant 0 : index
    %22 = memref.load %arg1[%c1_13, %c0_14] : memref<2x3xf32, #tpu.memory_space<smem>>
    %23 = vector.broadcast %22 : f32 to vector<8x128xf32>
    %24 = arith.mulf %23, %1 : vector<8x128xf32>
    %c1_15 = arith.constant 1 : index
    %c1_16 = arith.constant 1 : index
    %25 = memref.load %arg1[%c1_15, %c1_16] : memref<2x3xf32, #tpu.memory_space<smem>>
    %26 = vector.broadcast %25 : f32 to vector<8x128xf32>
    %27 = arith.mulf %26, %3 : vector<8x128xf32>
    %28 = arith.addf %24, %27 : vector<8x128xf32>
    %c1_17 = arith.constant 1 : index
    %c2_18 = arith.constant 2 : index
    %29 = memref.load %arg1[%c1_17, %c2_18] : memref<2x3xf32, #tpu.memory_space<smem>>
    %30 = vector.broadcast %29 : f32 to vector<8x128xf32>
    %31 = arith.mulf %30, %5 : vector<8x128xf32>
    %32 = arith.addf %28, %31 : vector<8x128xf32>
    %c1_19 = arith.constant 1 : index
    %33 = memref.load %arg2[%c1_19] : memref<2xf32, #tpu.memory_space<smem>>
    %34 = vector.broadcast %33 : f32 to vector<8x128xf32>
    %35 = arith.addf %32, %34 : vector<8x128xf32>
    %cst_20 = arith.constant 0.000000e+00 : f32
    %36 = vector.broadcast %cst_20 : f32 to vector<8x128xf32>
    %37 = arith.maximumf %35, %36 : vector<8x128xf32>
    %c0_21 = arith.constant 0 : index
    %c0_22 = arith.constant 0 : index
    %38 = memref.load %arg3[%c0_21, %c0_22] : memref<3x2xf32, #tpu.memory_space<smem>>
    %39 = vector.broadcast %38 : f32 to vector<8x128xf32>
    %40 = arith.mulf %39, %21 : vector<8x128xf32>
    %c0_23 = arith.constant 0 : index
    %c1_24 = arith.constant 1 : index
    %41 = memref.load %arg3[%c0_23, %c1_24] : memref<3x2xf32, #tpu.memory_space<smem>>
    %42 = vector.broadcast %41 : f32 to vector<8x128xf32>
    %43 = arith.mulf %42, %37 : vector<8x128xf32>
    %44 = arith.addf %40, %43 : vector<8x128xf32>
    %c0_25 = arith.constant 0 : index
    %45 = memref.load %arg4[%c0_25] : memref<3xf32, #tpu.memory_space<smem>>
    %46 = vector.broadcast %45 : f32 to vector<8x128xf32>
    %47 = arith.addf %44, %46 : vector<8x128xf32>
    %cst_26 = arith.constant 0.000000e+00 : f32
    %48 = vector.broadcast %cst_26 : f32 to vector<8x128xf32>
    %49 = arith.maximumf %47, %48 : vector<8x128xf32>
    %c0_27 = arith.constant 0 : index
    %c0_28 = arith.constant 0 : index
    %c0_29 = arith.constant 0 : index
    %50 = vector.load %arg6[%c0_27, %c0_28, %c0_29] : memref<3x8x128xf32, #tpu.memory_space<vmem>>, vector<1x8x128xf32>
    %51 = vector.shape_cast %50 : vector<1x8x128xf32> to vector<8x128xf32>
    %52 = vector.shape_cast %49 : vector<8x128xf32> to vector<1x8x128xf32>
    tpu.vector_store %arg6[%c0_27, %c0_28, %c0_29], %52 {strides = array<i32>} : memref<3x8x128xf32, #tpu.memory_space<vmem>>, vector<1x8x128xf32>,
    %c1_30 = arith.constant 1 : index
    %c0_31 = arith.constant 0 : index
    %53 = memref.load %arg3[%c1_30, %c0_31] : memref<3x2xf32, #tpu.memory_space<smem>>
    %54 = vector.broadcast %53 : f32 to vector<8x128xf32>
    %55 = arith.mulf %54, %21 : vector<8x128xf32>
    %c1_32 = arith.constant 1 : index
    %c1_33 = arith.constant 1 : index
    %56 = memref.load %arg3[%c1_32, %c1_33] : memref<3x2xf32, #tpu.memory_space<smem>>
    %57 = vector.broadcast %56 : f32 to vector<8x128xf32>
    %58 = arith.mulf %57, %37 : vector<8x128xf32>
    %59 = arith.addf %55, %58 : vector<8x128xf32>
    %c1_34 = arith.constant 1 : index
    %60 = memref.load %arg4[%c1_34] : memref<3xf32, #tpu.memory_space<smem>>
    %61 = vector.broadcast %60 : f32 to vector<8x128xf32>
    %62 = arith.addf %59, %61 : vector<8x128xf32>
    %cst_35 = arith.constant 0.000000e+00 : f32
    %63 = vector.broadcast %cst_35 : f32 to vector<8x128xf32>
    %64 = arith.maximumf %62, %63 : vector<8x128xf32>
    %c1_36 = arith.constant 1 : index
    %c0_37 = arith.constant 0 : index
    %c0_38 = arith.constant 0 : index
    %65 = vector.load %arg6[%c1_36, %c0_37, %c0_38] : memref<3x8x128xf32, #tpu.memory_space<vmem>>, vector<1x8x128xf32>
    %66 = vector.shape_cast %65 : vector<1x8x128xf32> to vector<8x128xf32>
    %67 = vector.shape_cast %64 : vector<8x128xf32> to vector<1x8x128xf32>
    tpu.vector_store %arg6[%c1_36, %c0_37, %c0_38], %67 {strides = array<i32>} : memref<3x8x128xf32, #tpu.memory_space<vmem>>, vector<1x8x128xf32>,
    %c2_39 = arith.constant 2 : index
    %c0_40 = arith.constant 0 : index
    %68 = memref.load %arg3[%c2_39, %c0_40] : memref<3x2xf32, #tpu.memory_space<smem>>
    %69 = vector.broadcast %68 : f32 to vector<8x128xf32>
    %70 = arith.mulf %69, %21 : vector<8x128xf32>
    %c2_41 = arith.constant 2 : index
    %c1_42 = arith.constant 1 : index
    %71 = memref.load %arg3[%c2_41, %c1_42] : memref<3x2xf32, #tpu.memory_space<smem>>
    %72 = vector.broadcast %71 : f32 to vector<8x128xf32>
    %73 = arith.mulf %72, %37 : vector<8x128xf32>
    %74 = arith.addf %70, %73 : vector<8x128xf32>
    %c2_43 = arith.constant 2 : index
    %75 = memref.load %arg4[%c2_43] : memref<3xf32, #tpu.memory_space<smem>>
    %76 = vector.broadcast %75 : f32 to vector<8x128xf32>
    %77 = arith.addf %74, %76 : vector<8x128xf32>
    %cst_44 = arith.constant 0.000000e+00 : f32
    %78 = vector.broadcast %cst_44 : f32 to vector<8x128xf32>
    %79 = arith.maximumf %77, %78 : vector<8x128xf32>
    %c2_45 = arith.constant 2 : index
    %c0_46 = arith.constant 0 : index
    %c0_47 = arith.constant 0 : index
    %80 = vector.load %arg6[%c2_45, %c0_46, %c0_47] : memref<3x8x128xf32, #tpu.memory_space<vmem>>, vector<1x8x128xf32>
    %81 = vector.shape_cast %80 : vector<1x8x128xf32> to vector<8x128xf32>
    %82 = vector.shape_cast %79 : vector<8x128xf32> to vector<1x8x128xf32>
    tpu.vector_store %arg6[%c2_45, %c0_46, %c0_47], %82 {strides = array<i32>} : memref<3x8x128xf32, #tpu.memory_space<vmem>>, vector<1x8x128xf32>,
    return
  }
  func.func @transform_0(%arg0: i32) -> (i32, i32) {
    %c0_i32 = arith.constant 0 : i32
    %c0_i32_0 = arith.constant 0 : i32
    %c0_i32_1 = arith.constant 0 : i32
    return %c0_i32, %c0_i32_0 : i32, i32
  }
  func.func @transform_1(%arg0: i32) -> i32 {
    %c0_i32 = arith.constant 0 : i32
    %c0_i32_0 = arith.constant 0 : i32
    return %c0_i32 : i32
  }
  func.func @transform_2(%arg0: i32) -> (i32, i32) {
    %c0_i32 = arith.constant 0 : i32
    %c0_i32_0 = arith.constant 0 : i32
    %c0_i32_1 = arith.constant 0 : i32
    return %c0_i32, %c0_i32_0 : i32, i32
  }
  func.func @transform_3(%arg0: i32) -> i32 {
    %c0_i32 = arith.constant 0 : i32
    %c0_i32_0 = arith.constant 0 : i32
    return %c0_i32 : i32
  }
  func.func @transform_4(%arg0: i32) -> (i32, i32, i32) {
    %c0_i32 = arith.constant 0 : i32
    %c0_i32_0 = arith.constant 0 : i32
    %c0_i32_1 = arith.constant 0 : i32
    return %c0_i32, %c0_i32_0, %arg0 : i32, i32, i32
  }
  func.func @transform_5(%arg0: i32) -> (i32, i32, i32) {
    %c0_i32 = arith.constant 0 : i32
    %c0_i32_0 = arith.constant 0 : i32
    %c0_i32_1 = arith.constant 0 : i32
    return %c0_i32, %c0_i32_0, %arg0 : i32, i32, i32
  }
}

</mosaic_0001>

<llo_original>
// kernel: autoencoder_forward.1
$region0: #{autoencoder_forward.1}
  #allocation0 [shape = 'u32[]', space=smem, size = 0x4, offset = 0x4, fixed_abs, tag = 'smem constant byte address 0x4 - core index']
  #allocation1 [shape = 'u32[144,128]{1,0:T(1,128)}', space=vmem, size = 0x12000, scoped, tag = 'internal scratch']
  %s0 = inlined_call_operand.vmem [shape: f32[2,3], index: 0, kind: input, shape index: {}]
  %s1 = inlined_call_operand.vmem [shape: f32[2], index: 1, kind: input, shape index: {}]
  %s2 = inlined_call_operand.vmem [shape: f32[3,2], index: 2, kind: input, shape index: {}]
  %s3 = inlined_call_operand.vmem [shape: f32[3], index: 3, kind: input, shape index: {}]
  %s4 = inlined_call_operand.vmem [shape: f32[3,8,1], index: 4, kind: input, shape index: {}]
  %s5 = inlined_call_operand.vmem [shape: f32[3,8,1], index: 5, kind: output, shape index: {}]
  %s6 = sld [smem:[#allocation0]]
  $region46: #{autoencoder_forward.1} parent=0
    _
  %s8 = ssub.s32 1, %s6
  %s9 = scalar_select 0, %s8, %s6
  $region1: #{autoencoder_forward.1} parent=0
    #allocation2 [shape = 'u8[1024]{0}', space=smem, size = 0x400, scoped, tag = 'input window, operand 0, single buffered']
    #allocation3 [shape = 's32[1]{0}', space=sflag, size = 0x4, scoped, tag = 'scoped memory for autoencoder_forward.1']
    #allocation4 [shape = 'u8[512]{0}', space=smem, size = 0x200, scoped, tag = 'input window, operand 1, single buffered']
    #allocation5 [shape = 's32[1]{0}', space=sflag, size = 0x4, scoped, tag = 'scoped memory for autoencoder_forward.1']
    #allocation6 [shape = 'u8[2048]{0}', space=smem, size = 0x800, scoped, tag = 'input window, operand 2, single buffered']
    #allocation7 [shape = 'u8[512]{0}', space=smem, size = 0x200, scoped, tag = 'input window, operand 3, single buffered']
    #allocation8 [shape = 's32[1]{0}', space=sflag, size = 0x4, scoped, tag = 'scoped memory for autoencoder_forward.1']
    %10 = vsyncpa [#allocation3], 0
    %11 = vsyncpa [#allocation5], 0
    %12 = vsyncpa [#allocation8], 0
    // Predicated region
    $region2: #{autoencoder_forward.1} parent=1 // pred_check
      _
    $region3: #{autoencoder_forward.1} parent=1 // pred_check_branch
      %14 = sbr.rel (0) target = $region5
    $region4: #{autoencoder_forward.1} parent=1 // pred_region
      %s16 = ssub.s32 32, 32
      %17 = vsyncadd [#allocation3], %s16
      %s19 = sshll.u32 %s0, 4
      %s20 = int_to_ptr.vmem [resolvable:$true] %s19
      %22 = dma.vmem_to_smem %s20, 32, [#allocation2], [#allocation3]
    $region5: #{autoencoder_forward.1} parent=1 // pred_fallthru
      _
    // Predicated region
    $region6: #{autoencoder_forward.1} parent=1 // pred_check
      _
    $region7: #{autoencoder_forward.1} parent=1 // pred_check_branch
      %24 = sbr.rel (0) target = $region9
    $region8: #{autoencoder_forward.1} parent=1 // pred_region
      %s26 = ssub.s32 16, 16
      %27 = vsyncadd [#allocation5], %s26
      %s29 = sshll.u32 %s1, 4
      %s30 = int_to_ptr.vmem [resolvable:$true] %s29
      %32 = dma.vmem_to_smem %s30, 16, [#allocation4], [#allocation5]
    $region9: #{autoencoder_forward.1} parent=1 // pred_fallthru
      _
    // Predicated region
    $region10: #{autoencoder_forward.1} parent=1 // pred_check
      _
    $region11: #{autoencoder_forward.1} parent=1 // pred_check_branch
      %34 = sbr.rel (0) target = $region13
    $region12: #{autoencoder_forward.1} parent=1 // pred_region
      %s36 = ssub.s32 64, 64
      %37 = vsyncadd [#allocation5], %s36
      %s39 = sshll.u32 %s2, 4
      %s40 = int_to_ptr.vmem [resolvable:$true] %s39
      %42 = dma.vmem_to_smem %s40, 64, [#allocation6], [#allocation5]
    $region13: #{autoencoder_forward.1} parent=1 // pred_fallthru
      _
    // Predicated region
    $region14: #{autoencoder_forward.1} parent=1 // pred_check
      _
    $region15: #{autoencoder_forward.1} parent=1 // pred_check_branch
      %44 = sbr.rel (0) target = $region17
    $region16: #{autoencoder_forward.1} parent=1 // pred_region
      %s46 = ssub.s32 16, 16
      %47 = vsyncadd [#allocation8], %s46
      %s49 = sshll.u32 %s3, 4
      %s50 = int_to_ptr.vmem [resolvable:$true] %s49
      %52 = dma.vmem_to_smem %s50, 16, [#allocation7], [#allocation8]
    $region17: #{autoencoder_forward.1} parent=1 // pred_fallthru
      _
    // Predicated region
    $region18: #{autoencoder_forward.1} parent=1 // pred_check
      _
    $region19: #{autoencoder_forward.1} parent=1 // pred_check_branch
      %54 = sbr.rel (0) target = $region21
    $region20: #{autoencoder_forward.1} parent=1 // pred_region
      _
    $region21: #{autoencoder_forward.1} parent=1 // pred_fallthru
      _
    // Predicated region
    $region22: #{autoencoder_forward.1} parent=1 // pred_check
      _
    $region23: #{autoencoder_forward.1} parent=1 // pred_check_branch
      %56 = sbr.rel (0) target = $region25
    $region24: #{autoencoder_forward.1} parent=1 // pred_region
      %57 = dma.done [#allocation3], 32
    $region25: #{autoencoder_forward.1} parent=1 // pred_fallthru
      _
    // Predicated region
    $region26: #{autoencoder_forward.1} parent=1 // pred_check
      _
    $region27: #{autoencoder_forward.1} parent=1 // pred_check_branch
      %59 = sbr.rel (0) target = $region29
    $region28: #{autoencoder_forward.1} parent=1 // pred_region
      %60 = dma.done [#allocation5], 16
    $region29: #{autoencoder_forward.1} parent=1 // pred_fallthru
      _
    // Predicated region
    $region30: #{autoencoder_forward.1} parent=1 // pred_check
      _
    $region31: #{autoencoder_forward.1} parent=1 // pred_check_branch
      %62 = sbr.rel (0) target = $region33
    $region32: #{autoencoder_forward.1} parent=1 // pred_region
      %63 = dma.done [#allocation5], 64
    $region33: #{autoencoder_forward.1} parent=1 // pred_fallthru
      _
    // Predicated region
    $region34: #{autoencoder_forward.1} parent=1 // pred_check
      _
    $region35: #{autoencoder_forward.1} parent=1 // pred_check_branch
      %65 = sbr.rel (0) target = $region37
    $region36: #{autoencoder_forward.1} parent=1 // pred_region
      %66 = dma.done [#allocation8], 16
    $region37: #{autoencoder_forward.1} parent=1 // pred_fallthru
      _
    %67 = sfence
    %v68 = vld [vmem:[%s4] sm:$0xff]
    %s69 = scalar_lea.vmem %s4, 8
    %v70 = vld [vmem:[%s69] sm:$0xff]
    %s71 = scalar_lea.vmem %s4, 16
    %v72 = vld [vmem:[%s71] sm:$0xff]
    %s73 = sld [smem:[#allocation2]]
    %v74 = vstv %s73
    %v75 = vmul.f32 %v74, %v68
    %s76 = sld [smem:[#allocation2 + $0x1]]
    %v77 = vstv %s76
    %v78 = vmul.f32 %v77, %v70
    %v79 = vadd.f32 %v75, %v78
    %s80 = sld [smem:[#allocation2 + $0x2]]
    %v81 = vstv %s80
    %v82 = vmul.f32 %v81, %v72
    %v83 = vadd.f32 %v79, %v82
    %s84 = sld [smem:[#allocation4]]
    %v85 = vstv %s84
    %v86 = vadd.f32 %v83, %v85
    %v87 = vmax.f32 %v86, 0.0
    %s88 = sld [smem:[#allocation2 + $0x80]]
    %v89 = vstv %s88
    %v90 = vmul.f32 %v89, %v68
    %s91 = sld [smem:[#allocation2 + $0x81]]
    %v92 = vstv %s91
    %v93 = vmul.f32 %v92, %v70
    %v94 = vadd.f32 %v90, %v93
    %s95 = sld [smem:[#allocation2 + $0x82]]
    %v96 = vstv %s95
    %v97 = vmul.f32 %v96, %v72
    %v98 = vadd.f32 %v94, %v97
    %s99 = sld [smem:[#allocation4 + $0x1]]
    %v100 = vstv %s99
    %v101 = vadd.f32 %v98, %v100
    %v102 = vmax.f32 %v101, 0.0
    %s103 = sld [smem:[#allocation6]]
    %v104 = vstv %s103
    %v105 = vmul.f32 %v104, %v87
    %s106 = sld [smem:[#allocation6 + $0x1]]
    %v107 = vstv %s106
    %v108 = vmul.f32 %v107, %v102
    %v109 = vadd.f32 %v105, %v108
    %s110 = sld [smem:[#allocation7]]
    %v111 = vstv %s110
    %v112 = vadd.f32 %v109, %v111
    %v113 = vmax.f32 %v112, 0.0
    %114 = vst [vmem:[%s5] sm:$0xff] %v113
    %s115 = sld [smem:[#allocation6 + $0x80]]
    %v116 = vstv %s115
    %v117 = vmul.f32 %v116, %v87
    %s118 = sld [smem:[#allocation6 + $0x81]]
    %v119 = vstv %s118
    %v120 = vmul.f32 %v119, %v102
    %v121 = vadd.f32 %v117, %v120
    %s122 = sld [smem:[#allocation7 + $0x1]]
    %v123 = vstv %s122
    %v124 = vadd.f32 %v121, %v123
    %v125 = vmax.f32 %v124, 0.0
    %s126 = scalar_lea.vmem %s5, 8
    %127 = vst [vmem:[%s126] sm:$0xff] %v125
    %s128 = sld [smem:[#allocation6 + $0x100]]
    %v129 = vstv %s128
    %v130 = vmul.f32 %v129, %v87
    %s131 = sld [smem:[#allocation6 + $0x101]]
    %v132 = vstv %s131
    %v133 = vmul.f32 %v132, %v102
    %v134 = vadd.f32 %v130, %v133
    %s135 = sld [smem:[#allocation7 + $0x2]]
    %v136 = vstv %s135
    %v137 = vadd.f32 %v134, %v136
    %v138 = vmax.f32 %v137, 0.0
    %s139 = scalar_lea.vmem %s5, 16
    %140 = vst [vmem:[%s139] sm:$0xff] %v138
    // Predicated region
    $region38: #{autoencoder_forward.1} parent=1 // pred_check
      _
    $region39: #{autoencoder_forward.1} parent=1 // pred_check_branch
      %142 = sbr.rel (0) target = $region41
    $region40: #{autoencoder_forward.1} parent=1 // pred_region
      _
    $region41: #{autoencoder_forward.1} parent=1 // pred_fallthru
      _
    // Predicated region
    $region42: #{autoencoder_forward.1} parent=1 // pred_check
      _
    $region43: #{autoencoder_forward.1} parent=1 // pred_check_branch
      %144 = sbr.rel (0) target = $region45
    $region44: #{autoencoder_forward.1} parent=1 // pred_region
      _
    $region45: #{autoencoder_forward.1} parent=1 // pred_fallthru
      _
    %145 = vsyncpa [#allocation3], 1
    %146 = vsyncpa [#allocation5], 1
    %147 = vsyncpa [#allocation8], 1

</llo_original>
